<compile_context>
chip_gen: v6e
topology: v6e:2x2x1
jax: 0.10.0
libtpu: 0.0.40
codegen_flags: <defaults>
</compile_context>

<pallas_src>
import functools

import jax
import jax.numpy as jnp
from jax.experimental import pallas as pl
from jax.experimental.pallas import tpu as pltpu


# ----------------------------------------------------------------------------
# Kernels.
# ----------------------------------------------------------------------------
def _anchor_rep_kernel(x_ref, o_ref, *, s2):
    # x_ref: (c_in, ROWS, 128), o_ref: (c_in*s2, ROWS, 128)
    c_in = x_ref.shape[0]
    for ci in range(c_in):                    # tiny (e.g. 3); unrolled at trace
        row = x_ref[ci]                       # full (ROWS, 128) block load
        for r in range(s2):
            o_ref[ci * s2 + r] = row          # full-block, unmasked store


def _conv1x1_vpu_kernel(w_ref, b_ref, x_ref, o_ref):
    # w_ref: (c_out, c_in) f32 in SMEM, b_ref: (c_out,) f32 in SMEM
    # x_ref: (c_in, ROWS, 128), o_ref: (c_out, ROWS, 128)
    # K=c_in (e.g. 3) matmul would use <1% of the MXU -> VPU FMA loop instead.
    c_out, c_in = w_ref.shape
    for co in range(c_out):
        acc = x_ref[0].astype(jnp.float32) * w_ref[co, 0]
        for ci in range(1, c_in):
            acc = acc + x_ref[ci].astype(jnp.float32) * w_ref[co, ci]
        o_ref[co] = (acc + b_ref[co]).astype(o_ref.dtype)


# ----------------------------------------------------------------------------
# Layout / tiling helpers.
# ----------------------------------------------------------------------------
def _vmem_limit_bytes():
    """Per-generation scoped VMEM limit (48 MiB on v7x, ~96 MiB on v5e/v6e)."""
    try:
        phys = int(pltpu.get_tpu_info().vmem_capacity_bytes)
    except Exception:
        phys = 64 << 20          # v7x worst case; safe on every generation
    return min(int(phys * 0.75), 112 << 20)


def _pick_rows(n_rows, n_batch, c_in, c_out, itemsize, vmem_limit):
    """Rows of 128 pixels per block: as large as VMEM allows, multiple of 8."""
    # Double-buffered in + out blocks of shape (c, rows, 128); rows%8==0 so the
    # padded VMEM footprint equals the logical footprint.
    per_row_vmem = 2 * (c_in + c_out) * 128 * itemsize
    budget = int(vmem_limit * 0.8)            # headroom for compiler temporaries
    rows_fit = max(8, (budget // per_row_vmem) // 8 * 8)
    # ~24 MiB of HBM traffic per step already amortises the ~0.35 us step cost
    # (>95% efficiency) on v5e/v6e/v7x; no need to go bigger.
    per_row_hbm = (c_in + c_out) * 128 * itemsize
    rows_cap = max(8, ((24 << 20) // per_row_hbm) // 8 * 8)
    rows_fit = min(rows_fit, rows_cap)

    if n_rows <= rows_fit:
        rows = n_rows
        # v7x has two TensorCores: keep the grid >= 2 steps for a single image.
        if n_batch == 1 and n_rows >= 16:
            half8 = -(-(-(-n_rows // 2)) // 8) * 8     # round_up(cdiv(n,2), 8)
            if half8 < n_rows:
                rows = half8
    else:
        rows = rows_fit
    return int(rows)


def _to_rows128(x_nchw):
    """NCHW -> (N, C, HW//128, 128); lane padding only if HW % 128 != 0."""
    n, c, h, w = x_nchw.shape
    hw = h * w
    n_rows = -(-hw // 128)
    hw_pad = n_rows * 128
    if hw_pad == hw:
        x4 = x_nchw.reshape(n, c, n_rows, 128)     # pure reshape, no HBM copy
    else:
        # TODO(synk): the ragged HW%128 tail costs one extra HBM round-trip
        # (pad + output slice); typical SR image sizes take the no-pad path.
        x3 = x_nchw.reshape(n, c, hw)
        x4 = jnp.pad(x3, ((0, 0), (0, 0), (0, hw_pad - hw)))
        x4 = x4.reshape(n, c, n_rows, 128)
    return x4, n_rows


def _from_rows128(out4, n, c_out, h, w):
    hw = h * w
    hw_pad = out4.shape[2] * 128
    if hw_pad == hw:
        return out4.reshape(n, c_out, h, w)        # pure reshape
    return out4.reshape(n, c_out, hw_pad)[:, :, :hw].reshape(n, c_out, h, w)


# ----------------------------------------------------------------------------
# Public wrappers.
# ----------------------------------------------------------------------------
@functools.partial(jax.jit, static_argnames=("scaling_factor",))
def anchor_op(x_nchw, scaling_factor):
    """AnchorOp.forward with default (frozen, replication) weights, bias=0."""
    n, c_in, h, w = x_nchw.shape
    s2 = scaling_factor ** 2
    c_out = c_in * s2
    itemsize = jnp.dtype(x_nchw.dtype).itemsize

    x4, n_rows = _to_rows128(x_nchw)
    vmem_limit = _vmem_limit_bytes()
    rows = _pick_rows(n_rows, n, c_in, c_out, itemsize, vmem_limit)
    num_row_tiles = -(-n_rows // rows)

    out4 = pl.pallas_call(
        functools.partial(_anchor_rep_kernel, s2=s2),
        out_shape=jax.ShapeDtypeStruct((n, c_out, n_rows, 128), x_nchw.dtype),
        grid=(n, num_row_tiles),
        in_specs=[
            pl.BlockSpec((None, c_in, rows, 128), lambda b, i: (b, 0, i, 0)),
        ],
        out_specs=pl.BlockSpec((None, c_out, rows, 128), lambda b, i: (b, 0, i, 0)),
        compiler_params=pltpu.CompilerParams(
            dimension_semantics=("parallel", "parallel"),
            vmem_limit_bytes=vmem_limit,
        ),
        cost_estimate=pl.CostEstimate(
            flops=0,
            transcendentals=0,
            bytes_accessed=itemsize * n * n_rows * 128 * (c_in + c_out),
        ),
    )(x4)

    return _from_rows128(out4, n, c_out, h, w)


@jax.jit
def anchor_conv1x1(x_nchw, weight, bias):
    """General 1x1 conv (AnchorOp with arbitrary / non-default Conv2d weights)."""
    n, c_in, h, w = x_nchw.shape
    if weight.ndim == 4:                          # raw PyTorch (c_out, c_in, 1, 1)
        weight = weight.reshape(weight.shape[0], weight.shape[1])
    c_out = weight.shape[0]
    itemsize = jnp.dtype(x_nchw.dtype).itemsize

    x4, n_rows = _to_rows128(x_nchw)
    vmem_limit = _vmem_limit_bytes()
    rows = _pick_rows(n_rows, n, c_in, c_out, itemsize, vmem_limit)
    num_row_tiles = -(-n_rows // rows)

    out4 = pl.pallas_call(
        _conv1x1_vpu_kernel,
        out_shape=jax.ShapeDtypeStruct((n, c_out, n_rows, 128), x_nchw.dtype),
        grid=(n, num_row_tiles),
        in_specs=[
            pl.BlockSpec(memory_space=pltpu.MemorySpace.SMEM),   # weight scalars
            pl.BlockSpec(memory_space=pltpu.MemorySpace.SMEM),   # bias scalars
            pl.BlockSpec((None, c_in, rows, 128), lambda b, i: (b, 0, i, 0)),
        ],
        out_specs=pl.BlockSpec((None, c_out, rows, 128), lambda b, i: (b, 0, i, 0)),
        compiler_params=pltpu.CompilerParams(
            dimension_semantics=("parallel", "parallel"),
            vmem_limit_bytes=vmem_limit,
        ),
        cost_estimate=pl.CostEstimate(
            flops=2 * c_in * c_out * n * n_rows * 128,
            transcendentals=0,
            bytes_accessed=itemsize * n * n_rows * 128 * (c_in + c_out)
            + 4 * (c_in * c_out + c_out),
        ),
    )(weight.astype(jnp.float32), bias.astype(jnp.float32), x4)

    return _from_rows128(out4, n, c_out, h, w)


def make_anchor_params(scaling_factor, in_channels, dtype=jnp.float32):
    """Deterministic AnchorOp weights: each input channel replicated s^2 times."""
    s2 = scaling_factor ** 2
    c_out = in_channels * s2
    w = jnp.zeros((c_out, in_channels), dtype=dtype)
    for ii in range(in_channels):
        w = w.at[ii * s2:(ii + 1) * s2, ii].set(1.0)
    b = jnp.zeros((c_out,), dtype=dtype)
    return w, b


if __name__ == "__main__":
    scaling_factor = 2
    in_channels = 3
    N, H, W = 2, 16, 16

    key = jax.random.PRNGKey(0)
    x = jax.random.normal(key, (N, in_channels, H, W), dtype=jnp.float32)

    # --- Default AnchorOp path: pure channel-replication copy. ---
    out = jax.block_until_ready(anchor_op(x, scaling_factor))
    weight, bias = make_anchor_params(scaling_factor, in_channels)
    ref = jnp.einsum("oc,nchw->nohw", weight, x) + bias[None, :, None, None]
    assert out.shape == (N, in_channels * scaling_factor ** 2, H, W)
    assert jnp.allclose(out, ref, atol=1e-6, rtol=1e-6)

    # --- General path (init_weights=False): random Conv2d weight/bias. ---
    c_out = in_channels * scaling_factor ** 2
    w2 = jax.random.normal(jax.random.PRNGKey(1), (c_out, in_channels, 1, 1),
                           dtype=jnp.float32)
    b2 = jax.random.normal(jax.random.PRNGKey(2), (c_out,), dtype=jnp.float32)
    out2 = jax.block_until_ready(anchor_conv1x1(x, w2, b2))
    ref2 = jnp.einsum("ocij,nchw->nohw", w2, x) + b2[None, :, None, None]
    assert jnp.allclose(out2, ref2, atol=1e-5, rtol=1e-5)

    # --- Ragged HW % 128 != 0 path (lane padding branch). ---
    x_odd = jax.random.normal(jax.random.PRNGKey(3), (1, in_channels, 10, 10),
                              dtype=jnp.float32)
    out3 = jax.block_until_ready(anchor_op(x_odd, scaling_factor))
    ref3 = jnp.einsum("oc,nchw->nohw", weight, x_odd)
    assert jnp.allclose(out3, ref3, atol=1e-6, rtol=1e-6)

    print("KERNEL_OK")
</pallas_src>

<mosaic_0001>
module attributes {stable_mosaic.version = 11 : i64} {
  func.func @_anchor_rep_kernel(%arg0: i32, %arg1: i32, %arg2: memref<1x3x2x128xf32, #tpu.memory_space<vmem>>, %arg3: memref<1x12x2x128xf32, #tpu.memory_space<vmem>>) attributes {dimension_semantics = [#tpu.dimension_semantics<parallel>, #tpu.dimension_semantics<parallel>], iteration_bounds = array<i64: 2, 1>, scalar_prefetch = 0 : i64, scratch_operands = 0 : i64, tpu.core_type = #tpu.core_type<tc>, window_params = [{transform_indices = @transform_0, window_bounds = array<i64: 1, 3, 2, 128>}, {transform_indices = @transform_1, window_bounds = array<i64: 1, 12, 2, 128>}]} {
    %c0 = arith.constant 0 : index
    %c0_0 = arith.constant 0 : index
    %c0_1 = arith.constant 0 : index
    %c0_2 = arith.constant 0 : index
    %0 = vector.load %arg2[%c0, %c0_0, %c0_1, %c0_2] : memref<1x3x2x128xf32, #tpu.memory_space<vmem>>, vector<1x1x2x128xf32>
    %1 = vector.shape_cast %0 : vector<1x1x2x128xf32> to vector<2x128xf32>
    %c0_3 = arith.constant 0 : index
    %c0_4 = arith.constant 0 : index
    %c0_5 = arith.constant 0 : index
    %c0_6 = arith.constant 0 : index
    %2 = vector.load %arg3[%c0_3, %c0_4, %c0_5, %c0_6] : memref<1x12x2x128xf32, #tpu.memory_space<vmem>>, vector<1x1x2x128xf32>
    %3 = vector.shape_cast %2 : vector<1x1x2x128xf32> to vector<2x128xf32>
    %4 = vector.shape_cast %1 : vector<2x128xf32> to vector<1x1x2x128xf32>
    tpu.vector_store %arg3[%c0_3, %c0_4, %c0_5, %c0_6], %4 {strides = array<i32>} : memref<1x12x2x128xf32, #tpu.memory_space<vmem>>, vector<1x1x2x128xf32>,
    %c0_7 = arith.constant 0 : index
    %c1 = arith.constant 1 : index
    %c0_8 = arith.constant 0 : index
    %c0_9 = arith.constant 0 : index
    %5 = vector.load %arg3[%c0_7, %c1, %c0_8, %c0_9] : memref<1x12x2x128xf32, #tpu.memory_space<vmem>>, vector<1x1x2x128xf32>
    %6 = vector.shape_cast %5 : vector<1x1x2x128xf32> to vector<2x128xf32>
    %7 = vector.shape_cast %1 : vector<2x128xf32> to vector<1x1x2x128xf32>
    tpu.vector_store %arg3[%c0_7, %c1, %c0_8, %c0_9], %7 {strides = array<i32>} : memref<1x12x2x128xf32, #tpu.memory_space<vmem>>, vector<1x1x2x128xf32>,
    %c0_10 = arith.constant 0 : index
    %c2 = arith.constant 2 : index
    %c0_11 = arith.constant 0 : index
    %c0_12 = arith.constant 0 : index
    %8 = vector.load %arg3[%c0_10, %c2, %c0_11, %c0_12] : memref<1x12x2x128xf32, #tpu.memory_space<vmem>>, vector<1x1x2x128xf32>
    %9 = vector.shape_cast %8 : vector<1x1x2x128xf32> to vector<2x128xf32>
    %10 = vector.shape_cast %1 : vector<2x128xf32> to vector<1x1x2x128xf32>
    tpu.vector_store %arg3[%c0_10, %c2, %c0_11, %c0_12], %10 {strides = array<i32>} : memref<1x12x2x128xf32, #tpu.memory_space<vmem>>, vector<1x1x2x128xf32>,
    %c0_13 = arith.constant 0 : index
    %c3 = arith.constant 3 : index
    %c0_14 = arith.constant 0 : index
    %c0_15 = arith.constant 0 : index
    %11 = vector.load %arg3[%c0_13, %c3, %c0_14, %c0_15] : memref<1x12x2x128xf32, #tpu.memory_space<vmem>>, vector<1x1x2x128xf32>
    %12 = vector.shape_cast %11 : vector<1x1x2x128xf32> to vector<2x128xf32>
    %13 = vector.shape_cast %1 : vector<2x128xf32> to vector<1x1x2x128xf32>
    tpu.vector_store %arg3[%c0_13, %c3, %c0_14, %c0_15], %13 {strides = array<i32>} : memref<1x12x2x128xf32, #tpu.memory_space<vmem>>, vector<1x1x2x128xf32>,
    %c0_16 = arith.constant 0 : index
    %c1_17 = arith.constant 1 : index
    %c0_18 = arith.constant 0 : index
    %c0_19 = arith.constant 0 : index
    %14 = vector.load %arg2[%c0_16, %c1_17, %c0_18, %c0_19] : memref<1x3x2x128xf32, #tpu.memory_space<vmem>>, vector<1x1x2x128xf32>
    %15 = vector.shape_cast %14 : vector<1x1x2x128xf32> to vector<2x128xf32>
    %c0_20 = arith.constant 0 : index
    %c4 = arith.constant 4 : index
    %c0_21 = arith.constant 0 : index
    %c0_22 = arith.constant 0 : index
    %16 = vector.load %arg3[%c0_20, %c4, %c0_21, %c0_22] : memref<1x12x2x128xf32, #tpu.memory_space<vmem>>, vector<1x1x2x128xf32>
    %17 = vector.shape_cast %16 : vector<1x1x2x128xf32> to vector<2x128xf32>
    %18 = vector.shape_cast %15 : vector<2x128xf32> to vector<1x1x2x128xf32>
    tpu.vector_store %arg3[%c0_20, %c4, %c0_21, %c0_22], %18 {strides = array<i32>} : memref<1x12x2x128xf32, #tpu.memory_space<vmem>>, vector<1x1x2x128xf32>,
    %c0_23 = arith.constant 0 : index
    %c5 = arith.constant 5 : index
    %c0_24 = arith.constant 0 : index
    %c0_25 = arith.constant 0 : index
    %19 = vector.load %arg3[%c0_23, %c5, %c0_24, %c0_25] : memref<1x12x2x128xf32, #tpu.memory_space<vmem>>, vector<1x1x2x128xf32>
    %20 = vector.shape_cast %19 : vector<1x1x2x128xf32> to vector<2x128xf32>
    %21 = vector.shape_cast %15 : vector<2x128xf32> to vector<1x1x2x128xf32>
    tpu.vector_store %arg3[%c0_23, %c5, %c0_24, %c0_25], %21 {strides = array<i32>} : memref<1x12x2x128xf32, #tpu.memory_space<vmem>>, vector<1x1x2x128xf32>,
    %c0_26 = arith.constant 0 : index
    %c6 = arith.constant 6 : index
    %c0_27 = arith.constant 0 : index
    %c0_28 = arith.constant 0 : index
    %22 = vector.load %arg3[%c0_26, %c6, %c0_27, %c0_28] : memref<1x12x2x128xf32, #tpu.memory_space<vmem>>, vector<1x1x2x128xf32>
    %23 = vector.shape_cast %22 : vector<1x1x2x128xf32> to vector<2x128xf32>
    %24 = vector.shape_cast %15 : vector<2x128xf32> to vector<1x1x2x128xf32>
    tpu.vector_store %arg3[%c0_26, %c6, %c0_27, %c0_28], %24 {strides = array<i32>} : memref<1x12x2x128xf32, #tpu.memory_space<vmem>>, vector<1x1x2x128xf32>,
    %c0_29 = arith.constant 0 : index
    %c7 = arith.constant 7 : index
    %c0_30 = arith.constant 0 : index
    %c0_31 = arith.constant 0 : index
    %25 = vector.load %arg3[%c0_29, %c7, %c0_30, %c0_31] : memref<1x12x2x128xf32, #tpu.memory_space<vmem>>, vector<1x1x2x128xf32>
    %26 = vector.shape_cast %25 : vector<1x1x2x128xf32> to vector<2x128xf32>
    %27 = vector.shape_cast %15 : vector<2x128xf32> to vector<1x1x2x128xf32>
    tpu.vector_store %arg3[%c0_29, %c7, %c0_30, %c0_31], %27 {strides = array<i32>} : memref<1x12x2x128xf32, #tpu.memory_space<vmem>>, vector<1x1x2x128xf32>,
    %c0_32 = arith.constant 0 : index
    %c2_33 = arith.constant 2 : index
    %c0_34 = arith.constant 0 : index
    %c0_35 = arith.constant 0 : index
    %28 = vector.load %arg2[%c0_32, %c2_33, %c0_34, %c0_35] : memref<1x3x2x128xf32, #tpu.memory_space<vmem>>, vector<1x1x2x128xf32>
    %29 = vector.shape_cast %28 : vector<1x1x2x128xf32> to vector<2x128xf32>
    %c0_36 = arith.constant 0 : index
    %c8 = arith.constant 8 : index
    %c0_37 = arith.constant 0 : index
    %c0_38 = arith.constant 0 : index
    %30 = vector.load %arg3[%c0_36, %c8, %c0_37, %c0_38] : memref<1x12x2x128xf32, #tpu.memory_space<vmem>>, vector<1x1x2x128xf32>
    %31 = vector.shape_cast %30 : vector<1x1x2x128xf32> to vector<2x128xf32>
    %32 = vector.shape_cast %29 : vector<2x128xf32> to vector<1x1x2x128xf32>
    tpu.vector_store %arg3[%c0_36, %c8, %c0_37, %c0_38], %32 {strides = array<i32>} : memref<1x12x2x128xf32, #tpu.memory_space<vmem>>, vector<1x1x2x128xf32>,
    %c0_39 = arith.constant 0 : index
    %c9 = arith.constant 9 : index
    %c0_40 = arith.constant 0 : index
    %c0_41 = arith.constant 0 : index
    %33 = vector.load %arg3[%c0_39, %c9, %c0_40, %c0_41] : memref<1x12x2x128xf32, #tpu.memory_space<vmem>>, vector<1x1x2x128xf32>
    %34 = vector.shape_cast %33 : vector<1x1x2x128xf32> to vector<2x128xf32>
    %35 = vector.shape_cast %29 : vector<2x128xf32> to vector<1x1x2x128xf32>
    tpu.vector_store %arg3[%c0_39, %c9, %c0_40, %c0_41], %35 {strides = array<i32>} : memref<1x12x2x128xf32, #tpu.memory_space<vmem>>, vector<1x1x2x128xf32>,
    %c0_42 = arith.constant 0 : index
    %c10 = arith.constant 10 : index
    %c0_43 = arith.constant 0 : index
    %c0_44 = arith.constant 0 : index
    %36 = vector.load %arg3[%c0_42, %c10, %c0_43, %c0_44] : memref<1x12x2x128xf32, #tpu.memory_space<vmem>>, vector<1x1x2x128xf32>
    %37 = vector.shape_cast %36 : vector<1x1x2x128xf32> to vector<2x128xf32>
    %38 = vector.shape_cast %29 : vector<2x128xf32> to vector<1x1x2x128xf32>
    tpu.vector_store %arg3[%c0_42, %c10, %c0_43, %c0_44], %38 {strides = array<i32>} : memref<1x12x2x128xf32, #tpu.memory_space<vmem>>, vector<1x1x2x128xf32>,
    %c0_45 = arith.constant 0 : index
    %c11 = arith.constant 11 : index
    %c0_46 = arith.constant 0 : index
    %c0_47 = arith.constant 0 : index
    %39 = vector.load %arg3[%c0_45, %c11, %c0_46, %c0_47] : memref<1x12x2x128xf32, #tpu.memory_space<vmem>>, vector<1x1x2x128xf32>
    %40 = vector.shape_cast %39 : vector<1x1x2x128xf32> to vector<2x128xf32>
    %41 = vector.shape_cast %29 : vector<2x128xf32> to vector<1x1x2x128xf32>
    tpu.vector_store %arg3[%c0_45, %c11, %c0_46, %c0_47], %41 {strides = array<i32>} : memref<1x12x2x128xf32, #tpu.memory_space<vmem>>, vector<1x1x2x128xf32>,
    return
  }
  func.func @transform_0(%arg0: i32, %arg1: i32) -> (i32, i32, i32, i32) {
    %c0_i32 = arith.constant 0 : i32
    %c0_i32_0 = arith.constant 0 : i32
    %c0_i32_1 = arith.constant 0 : i32
    return %arg0, %c0_i32, %arg1, %c0_i32_0 : i32, i32, i32, i32
  }
  func.func @transform_1(%arg0: i32, %arg1: i32) -> (i32, i32, i32, i32) {
    %c0_i32 = arith.constant 0 : i32
    %c0_i32_0 = arith.constant 0 : i32
    %c0_i32_1 = arith.constant 0 : i32
    return %arg0, %c0_i32, %arg1, %c0_i32_0 : i32, i32, i32, i32
  }
}

</mosaic_0001>

<llo_original>
// kernel: anchor_op.1
$region0: #{anchor_op.1}
  #allocation0 [shape = 'u32[]', space=smem, size = 0x4, offset = 0x4, fixed_abs, tag = 'smem constant byte address 0x4 - core index']
  #allocation1 [shape = 'u32[144,128]{1,0:T(1,128)}', space=vmem, size = 0x12000, scoped, tag = 'internal scratch']
  %s0 = inlined_call_operand.vmem [shape: f32[2,3,2,128], index: 0, kind: input, shape index: {}]
  %s1 = inlined_call_operand.vmem [shape: f32[2,12,2,128], index: 1, kind: output, shape index: {}]
  %s2 = sld [smem:[#allocation0]]
  $region37: #{anchor_op.1} parent=0
    _
  %s4 = ssub.s32 1, %s2
  %s5 = scalar_select 0, %s4, %s2
  loop: start=0, step=1, limit=4
  $region2: #{anchor_op.1} parent=0 // loop_pre_header
    _
  $region3: #{anchor_op.1} parent=0 // loop_header
    %s7 = sphi 0, %s11
    %p8 = scmp.ge.s32.totalorder %s7, 4
    %s14 = sphi 0, %s26
    %s15 = sphi 0, %s22
    %s16 = sphi 0, %s14
    %s17 = sphi 0, %s15
    %s18 = sphi 0, %s16
    %s19 = sphi 0, %s17
    %s31 = sphi 0, %s33
    %s34 = sphi 0, %s31
    %s35 = sphi 0, %s34
    %s51 = sphi 0, %s35
    %s59 = sphi 0, %s61
    %s62 = sphi 0, %s59
    %s63 = sphi 0, %s62
    %s79 = sphi 0, %s63
  $region4: #{anchor_op.1} parent=0 // loop_header_branch
    %10 = sbr.rel (%p8) target = $region8
  $region5: #{anchor_op.1} parent=0 // loop_body
    %s12 = ssub.s32 %s7, 1
    %s13 = ssub.s32 %s7, 2
    %s20 = sadd.s32 1, %s15
    %p21 = scmp.ge.s32.totalorder %s20, 1
    %s22 = scalar_select %p21, 0, %s20
    %s23 = sadd.s32 1, %s14
    %s24 = scalar_select %p21, %s23, %s14
    %p25 = scmp.ge.s32.totalorder %s24, 2
    %s26 = scalar_select %p25, 0, %s24
    %s27 = ssub.s32 %s14, %s26
    %s28 = ssub.s32 %s15, %s22
    %s29 = sor.u32 %s27, %s28
    %p30 = scmp.eq.s32.totalorder %s29, 0
    %s32 = sadd.s32 %s31, 1
    %s33 = scalar_select %p30, %s31, %s32
    %p36 = pneg %p30
    %p37 = scmp.eq.s32.totalorder %s7, 1
    %p38 = por %p36, %p37
    %p39 = scmp.ne.s32.totalorder %s31, %s34
    %p40 = scmp.eq.s32.totalorder %s7, 0
    %p41 = por %p39, %p40
    %p42 = scmp.ne.s32.totalorder %s31, %s34
    %p43 = scmp.eq.s32.totalorder %s12, 1
    %p44 = por %p42, %p43
    %p45 = scmp.ne.s32.totalorder %s34, %s35
    %p46 = scmp.eq.s32.totalorder %s12, 0
    %p47 = por %p45, %p46
    %p48 = scmp.ne.s32.totalorder %s34, %s35
    %p49 = scmp.eq.s32.totalorder %s13, 1
    %p50 = por %p48, %p49
    %p52 = scmp.ne.s32.totalorder %s35, %s51
    %p53 = scmp.eq.s32.totalorder %s13, 0
    %p54 = por %p52, %p53
    %s55 = ssub.s32 %s14, %s26
    %s56 = ssub.s32 %s15, %s22
    %s57 = sor.u32 %s55, %s56
    %p58 = scmp.eq.s32.totalorder %s57, 0
    %s60 = sadd.s32 %s59, 1
    %s61 = scalar_select %p58, %s59, %s60
    %p64 = pneg %p58
    %p65 = scmp.eq.s32.totalorder %s7, 1
    %p66 = por %p64, %p65
    %p67 = scmp.ne.s32.totalorder %s59, %s62
    %p68 = scmp.eq.s32.totalorder %s7, 0
    %p69 = por %p67, %p68
    %p70 = scmp.ne.s32.totalorder %s59, %s62
    %p71 = scmp.eq.s32.totalorder %s12, 1
    %p72 = por %p70, %p71
    %p73 = scmp.ne.s32.totalorder %s62, %s63
    %p74 = scmp.eq.s32.totalorder %s12, 0
    %p75 = por %p73, %p74
    %p76 = scmp.ne.s32.totalorder %s62, %s63
    %p77 = scmp.eq.s32.totalorder %s13, 1
    %p78 = por %p76, %p77
    %p80 = scmp.ne.s32.totalorder %s63, %s79
    %p81 = scmp.eq.s32.totalorder %s13, 0
    %p82 = por %p80, %p81
    %p83 = scmp.le.s32.totalorder 1, %s7
    %p84 = scmp.lt.s32.totalorder %s7, 3
    %p85 = pnand %p83, %p84
    %p86 = pneg %p85
    // Predicated region
    $region9: #{anchor_op.1} parent=5 // pred_check
      _
    $region10: #{anchor_op.1} parent=5 // pred_check_branch
      %88 = sbr.rel (%p85) target = $region12
    $region11: #{anchor_op.1} parent=5 // pred_region
      %s89 = ssub.s32 %s7, 1
    $region12: #{anchor_op.1} parent=5 // pred_fallthru
      _
    %p90 = scmp.lt.s32.totalorder %s7, 2
    // Predicated region
    $region13: #{anchor_op.1} parent=5 // pred_check
      %p91 = pneg %p90
    $region14: #{anchor_op.1} parent=5 // pred_check_branch
      %93 = sbr.rel (%p91) target = $region16
    $region15: #{anchor_op.1} parent=5 // pred_region
      // Predicated region
      $region17: #{anchor_op.1} parent=15 // pred_check
        %p94 = pneg %p41
      $region18: #{anchor_op.1} parent=15 // pred_check_branch
        %96 = sbr.rel (%p94) target = $region20
      $region19: #{anchor_op.1} parent=15 // pred_region
        %p97 = scmp.lt.s32.totalorder %s14, 1
        %s98 = scalar_select %p97, %s14, 1
        %p99 = scmp.lt.s32.totalorder %s15, 0
        %s100 = scalar_select %p99, %s15, 0
        %s101 = smul.addr %s98, 3
        %s102 = sadd.s32 %s100, %s101
        %s103 = smul.addr %s102, 2
        %s104 = scalar_lea.vmem %s0, %s103
      $region20: #{anchor_op.1} parent=15 // pred_fallthru
        _
    $region16: #{anchor_op.1} parent=5 // pred_fallthru
      _
    %p105 = scmp.le.s32.totalorder 1, %s7
    %p106 = scmp.lt.s32.totalorder %s7, 3
    %p107 = pnand %p105, %p106
    %p108 = pneg %p107
    // Predicated region
    $region21: #{anchor_op.1} parent=5 // pred_check
      _
    $region22: #{anchor_op.1} parent=5 // pred_check_branch
      %110 = sbr.rel (%p107) target = $region24
    $region23: #{anchor_op.1} parent=5 // pred_region
      %s111 = ssub.s32 %s7, 1
      %p112 = scmp.lt.s32.totalorder %s16, 1
      %s113 = scalar_select %p112, %s16, 1
      %p114 = scmp.lt.s32.totalorder %s17, 0
      %s115 = scalar_select %p114, %s17, 0
      %s116 = smul.addr %s113, 3
      %s117 = sadd.s32 %s115, %s116
      %s118 = smul.addr %s117, 2
      %s119 = scalar_lea.vmem %s0, %s118
      %p120 = pneg %p47
      %p121 = pneg %p44
      %p122 = pneg %p75
      %p123 = pneg %p72
      %p124 = scmp.lt.s32.totalorder %s16, 1
      %s125 = scalar_select %p124, %s16, 1
      %p126 = scmp.lt.s32.totalorder %s17, 0
      %s127 = scalar_select %p126, %s17, 0
      %s128 = smul.addr %s125, 12
      %s129 = sadd.s32 %s127, %s128
      %s130 = smul.addr %s129, 2
      %s131 = scalar_lea.vmem %s1, %s130
      %p132 = scmp.lt.s32.totalorder %s16, 1
      %s133 = scalar_select %p132, %s16, 1
      %p134 = scmp.lt.s32.totalorder %s17, 0
      %s135 = scalar_select %p134, %s17, 0
      %s136 = smul.addr %s133, 3
      %s137 = sadd.s32 %s135, %s136
      %s138 = smul.addr %s137, 2
      %s139 = scalar_lea.vmem %s0, %s138
      %p140 = scmp.lt.s32.totalorder %s16, 1
      %s141 = scalar_select %p140, %s16, 1
      %p142 = scmp.lt.s32.totalorder %s17, 0
      %s143 = scalar_select %p142, %s17, 0
      %s144 = smul.addr %s141, 12
      %s145 = sadd.s32 %s143, %s144
      %s146 = smul.addr %s145, 2
      %s147 = scalar_lea.vmem %s1, %s146
      %v148 = vld [vmem:[%s139] sm:$0x3]
      %149 = vst [vmem:[%s147] sm:$0x3] %v148
      %s150 = scalar_lea.vmem %s147, 2
      %151 = vst [vmem:[%s150] sm:$0x3] %v148
      %s152 = scalar_lea.vmem %s147, 4
      %153 = vst [vmem:[%s152] sm:$0x3] %v148
      %s154 = scalar_lea.vmem %s147, 6
      %155 = vst [vmem:[%s154] sm:$0x3] %v148
      %s156 = scalar_lea.vmem %s139, 2
      %v157 = vld [vmem:[%s156] sm:$0x3]
      %s158 = scalar_lea.vmem %s147, 8
      %159 = vst [vmem:[%s158] sm:$0x3] %v157
      %s160 = scalar_lea.vmem %s147, 10
      %161 = vst [vmem:[%s160] sm:$0x3] %v157
      %s162 = scalar_lea.vmem %s147, 12
      %163 = vst [vmem:[%s162] sm:$0x3] %v157
      %s164 = scalar_lea.vmem %s147, 14
      %165 = vst [vmem:[%s164] sm:$0x3] %v157
      %s166 = scalar_lea.vmem %s139, 4
      %v167 = vld [vmem:[%s166] sm:$0x3]
      %s168 = scalar_lea.vmem %s147, 16
      %169 = vst [vmem:[%s168] sm:$0x3] %v167
      %s170 = scalar_lea.vmem %s147, 18
      %171 = vst [vmem:[%s170] sm:$0x3] %v167
      %s172 = scalar_lea.vmem %s147, 20
      %173 = vst [vmem:[%s172] sm:$0x3] %v167
      %s174 = scalar_lea.vmem %s147, 22
      %175 = vst [vmem:[%s174] sm:$0x3] %v167
      %p176 = scmp.lt.s32.totalorder %s16, 1
      %s177 = scalar_select %p176, %s16, 1
      %p178 = scmp.lt.s32.totalorder %s17, 0
      %s179 = scalar_select %p178, %s17, 0
      %s180 = smul.addr %s177, 12
      %s181 = sadd.s32 %s179, %s180
      %s182 = smul.addr %s181, 2
      %s183 = scalar_lea.vmem %s1, %s182
      // Predicated region
      $region25: #{anchor_op.1} parent=23 // pred_check
        %p184 = pneg %p72
      $region26: #{anchor_op.1} parent=23 // pred_check_branch
        %186 = sbr.rel (%p184) target = $region28
      $region27: #{anchor_op.1} parent=23 // pred_region
        _
      $region28: #{anchor_op.1} parent=23 // pred_fallthru
        _
    $region24: #{anchor_op.1} parent=5 // pred_fallthru
      _
    %p187 = scmp.le.s32.totalorder 2, %s7
    // Predicated region
    $region29: #{anchor_op.1} parent=5 // pred_check
      %p188 = pneg %p187
    $region30: #{anchor_op.1} parent=5 // pred_check_branch
      %190 = sbr.rel (%p188) target = $region32
    $region31: #{anchor_op.1} parent=5 // pred_region
      %s191 = ssub.s32 %s7, 2
      // Predicated region
      $region33: #{anchor_op.1} parent=31 // pred_check
        %p192 = pneg %p78
      $region34: #{anchor_op.1} parent=31 // pred_check_branch
        %194 = sbr.rel (%p192) target = $region36
      $region35: #{anchor_op.1} parent=31 // pred_region
        %p195 = scmp.lt.s32.totalorder %s18, 1
        %s196 = scalar_select %p195, %s18, 1
        %p197 = scmp.lt.s32.totalorder %s19, 0
        %s198 = scalar_select %p197, %s19, 0
        %s199 = smul.addr %s196, 12
        %s200 = sadd.s32 %s198, %s199
        %s201 = smul.addr %s200, 2
        %s202 = scalar_lea.vmem %s1, %s201
      $region36: #{anchor_op.1} parent=31 // pred_fallthru
        _
    $region32: #{anchor_op.1} parent=5 // pred_fallthru
      _
  $region6: #{anchor_op.1} parent=0 // loop_footer
    %s11 = sadd.s32 1, %s7
  $region7: #{anchor_op.1} parent=0 // loop_footer_branch
    %6 = sbr.rel target = $region3
  $region8: #{anchor_op.1} parent=0 // loop_exit
    _

</llo_original>
